<compile_context>
chip_gen: v7x
topology: tpu7x:2x2x1
jax: 0.10.0
libtpu: 0.0.40
codegen_flags: <defaults>
</compile_context>

<pallas_src>
import jax
import jax.numpy as jnp
from jax.experimental import pallas as pl
from jax.experimental.pallas import tpu as pltpu

# ----------------------------- configuration --------------------------------
NUM_CLASSES = 20
EMB_DIM     = 32      # embedding dim == inp_dim
OUTPUT_DIM  = 32      # hidden / output dim
BATCH       = 2
NUM_PREDS   = 8       # goal predicates per sample (seq length)


# ------------------------------- kernel -------------------------------------
def goal_encoder_kernel(x1_ref, mask_ref, wp_ref, out_ref):
    # x1_ref:   [B*P, H] f32  layer-1 pre-activation (emb-folded matmul + b1)
    # mask_ref: [B*P, 1] f32  goal-predicate mask, one value per folded row
    # wp_ref:   [H+1, H] f32  packed params: rows 0..H-1 = W2, row H = b2
    # out_ref:  [B, H]   f32
    B, H = out_ref.shape
    P = x1_ref.shape[0] // B

    # Layer 1 activation (f32 elementwise — v5e-safe).
    h1 = jnp.maximum(x1_ref[...], 0.0)

    # Static, tile-aligned slices of the packed parameter block (free).
    w2 = wp_ref[0:H, :].astype(jnp.bfloat16)       # bf16 → native single-pass MXU
    b2 = wp_ref[H:H + 1, :]                        # [1, H] f32, broadcasts over rows

    # Layer 2: bf16 MXU inputs, f32 accumulation, f32 bias/ReLU.
    h2 = jnp.dot(h1.astype(jnp.bfloat16), w2,
                 preferred_element_type=jnp.float32) + b2
    h2 = jnp.maximum(h2, 0.0)                      # [B*P, H] f32

    # Masked sum over predicates as an in-kernel sublane reduce:
    # out[b] = sum_p mask[b,p] * h2[b*P + p].  P == 8 == one sublane group.
    hm = h2 * mask_ref[...]                        # lane-broadcast of [B*P, 1]
    out_ref[...] = hm.reshape(B, P, H).sum(axis=1)


def goal_encoder_forward(params, object_class, loc_class, mask_goal_pred):
    """Pallas GoalEncoder forward.

    object_class, loc_class: [B, P] int32; mask_goal_pred: [B, P] float.
    Returns [B, H] f32.
    """
    B, P = object_class.shape
    D = params["embedding"].shape[1]
    H = params["w2"].shape[1]
    E = params["embedding"]
    w1, b1, w2, b2 = params["w1"], params["b1"], params["w2"], params["b2"]

    # --- parameter-only precompute (would be done once per param set) --------
    # Algebraic fold of embedding + layer 1: Emb(ids) @ W1 == (E @ W1)[ids].
    t_obj = E @ w1[:D, :] + b1                     # [C, H]  (b1 folded in)
    t_loc = E @ w1[D:, :]                          # [C, H]
    wpack = jnp.concatenate([w2, b2], axis=0)      # [H+1, H] single param DMA

    # --- per-call glue (gather has no clean dense Pallas equivalent) ---------
    x1 = (t_obj[object_class] + t_loc[loc_class]).reshape(B * P, H)
    mask = mask_goal_pred.astype(jnp.float32).reshape(B * P, 1)

    vmem = pl.BlockSpec(memory_space=pltpu.MemorySpace.VMEM)
    return pl.pallas_call(
        goal_encoder_kernel,
        out_shape=jax.ShapeDtypeStruct((B, H), jnp.float32),
        in_specs=[vmem, vmem, vmem],
        out_specs=vmem,
    )(x1, mask, wpack)


# --------------------------- pure-JAX reference ------------------------------
def reference_forward(params, object_class, loc_class, mask_goal_pred):
    obj = params["embedding"][object_class]
    loc = params["embedding"][loc_class]
    x = jnp.concatenate([obj, loc], axis=-1)
    h = jax.nn.relu(x @ params["w1"] + params["b1"])
    h = jax.nn.relu(h @ params["w2"] + params["b2"])
    return (h * mask_goal_pred[..., None]).sum(1)


# ------------------------------- params --------------------------------------
def init_params(key):
    ks = jax.random.split(key, 5)
    s = 0.1
    return {
        "embedding": s * jax.random.normal(ks[0], (NUM_CLASSES, EMB_DIM), jnp.float32),
        "w1": s * jax.random.normal(ks[1], (2 * EMB_DIM, OUTPUT_DIM), jnp.float32),
        "b1": s * jax.random.normal(ks[2], (1, OUTPUT_DIM), jnp.float32),
        "w2": s * jax.random.normal(ks[3], (OUTPUT_DIM, OUTPUT_DIM), jnp.float32),
        "b2": s * jax.random.normal(ks[4], (1, OUTPUT_DIM), jnp.float32),
    }


if __name__ == "__main__":
    key = jax.random.PRNGKey(0)
    kp, ko, kl, km = jax.random.split(key, 4)

    params = init_params(kp)
    object_class = jax.random.randint(ko, (BATCH, NUM_PREDS), 0, NUM_CLASSES, jnp.int32)
    loc_class = jax.random.randint(kl, (BATCH, NUM_PREDS), 0, NUM_CLASSES, jnp.int32)
    mask_goal_pred = (jax.random.uniform(km, (BATCH, NUM_PREDS), jnp.float32) > 0.5
                      ).astype(jnp.float32)

    out = goal_encoder_forward(params, object_class, loc_class, mask_goal_pred)
    out = jax.block_until_ready(out)

    ref = reference_forward(params, object_class, loc_class, mask_goal_pred)
    assert out.shape == (BATCH, OUTPUT_DIM)
    # Layer-2 matmul uses bf16 MXU inputs (f32 accumulation), so compare with a
    # bf16-appropriate tolerance rather than the f32 bit-level 1e-5.
    assert jnp.allclose(out, ref, atol=2e-2, rtol=2e-2), "mismatch vs JAX reference"

    print("KERNEL_OK")
</pallas_src>

<mosaic_0001>
module attributes {stable_mosaic.version = 11 : i64} {
  func.func @goal_encoder_kernel(%arg0: memref<16x32xf32, #tpu.memory_space<vmem>>, %arg1: memref<16x1xf32, #tpu.memory_space<vmem>>, %arg2: memref<33x32xf32, #tpu.memory_space<vmem>>, %arg3: memref<2x32xf32, #tpu.memory_space<vmem>>) attributes {dimension_semantics = [], scalar_prefetch = 0 : i64, scratch_operands = 0 : i64, tpu.core_type = #tpu.core_type<tc>} {
    %c0 = arith.constant 0 : index
    %c0_0 = arith.constant 0 : index
    %0 = vector.load %arg0[%c0, %c0_0] : memref<16x32xf32, #tpu.memory_space<vmem>>, vector<16x32xf32>
    %cst = arith.constant 0.000000e+00 : f32
    %1 = vector.broadcast %cst : f32 to vector<16x32xf32>
    %2 = arith.maximumf %0, %1 : vector<16x32xf32>
    %c0_1 = arith.constant 0 : index
    %c0_2 = arith.constant 0 : index
    %3 = vector.load %arg2[%c0_1, %c0_2] : memref<33x32xf32, #tpu.memory_space<vmem>>, vector<32x32xf32>
    %4 = arith.truncf %3 : vector<32x32xf32> to vector<32x32xbf16>
    %c32 = arith.constant 32 : index
    %c0_3 = arith.constant 0 : index
    %5 = vector.load %arg2[%c32, %c0_3] : memref<33x32xf32, #tpu.memory_space<vmem>>, vector<1x32xf32>
    %6 = arith.truncf %2 : vector<16x32xf32> to vector<16x32xbf16>
    %cst_4 = arith.constant dense<0.000000e+00> : vector<16x32xf32>
    %7 = tpu.matmul %6, %4, %cst_4 {dimension_numbers = #tpu.dot_dimension_numbers<[1], [0], [0], [1], [0, 0, 1, 1], [], []>} : vector<16x32xbf16>, vector<32x32xbf16>, vector<16x32xf32> -> vector<16x32xf32>
    %8 = vector.broadcast %5 : vector<1x32xf32> to vector<16x32xf32>
    %9 = arith.addf %7, %8 : vector<16x32xf32>
    %cst_5 = arith.constant 0.000000e+00 : f32
    %10 = vector.broadcast %cst_5 : f32 to vector<16x32xf32>
    %11 = arith.maximumf %9, %10 : vector<16x32xf32>
    %c0_6 = arith.constant 0 : index
    %c0_7 = arith.constant 0 : index
    %12 = vector.load %arg1[%c0_6, %c0_7] : memref<16x1xf32, #tpu.memory_space<vmem>>, vector<16x1xf32>
    %13 = vector.broadcast %12 : vector<16x1xf32> to vector<16x32xf32>
    %14 = arith.mulf %11, %13 : vector<16x32xf32>
    %15 = vector.shape_cast %14 : vector<16x32xf32> to vector<2x8x32xf32>
    %cst_8 = arith.constant dense<0.000000e+00> : vector<2x32xf32>
    %16 = vector.multi_reduction <add>, %15, %cst_8 [1] : vector<2x8x32xf32> to vector<2x32xf32>
    %c0_9 = arith.constant 0 : index
    %c0_10 = arith.constant 0 : index
    %17 = vector.load %arg3[%c0_9, %c0_10] : memref<2x32xf32, #tpu.memory_space<vmem>>, vector<2x32xf32>
    tpu.vector_store %arg3[%c0_9, %c0_10], %16 {strides = array<i32>} : memref<2x32xf32, #tpu.memory_space<vmem>>, vector<2x32xf32>,
    return
  }
}

</mosaic_0001>

<llo_original>
// kernel: tpu_custom_call.1
$region0: #{tpu_custom_call.1}
  #allocation0 [shape = 'u32[]', space=smem, size = 0x4, offset = 0x4, fixed_abs, tag = 'smem constant byte address 0x4 - core index']
  #allocation1 [shape = 'u32[144,128]{1,0:T(1,128)}', space=vmem, size = 0x12000, scoped, tag = 'internal scratch']
  %s0 = inlined_call_operand.vmem [shape: f32[16,32], index: 0, kind: input, shape index: {}]
  %s1 = inlined_call_operand.vmem [shape: f32[16,1], index: 1, kind: input, shape index: {}]
  %s2 = inlined_call_operand.vmem [shape: f32[33,32], index: 2, kind: input, shape index: {}]
  %s3 = inlined_call_operand.hbm [shape: f32[2,32], index: 3, kind: output, shape index: {}]
  %s4 = sld [smem:[#allocation0]]
  $region22: #{tpu_custom_call.1} parent=0
    _
  %s6 = ssub.s32 1, %s4
  %s7 = scalar_select 0, %s6, %s4
  $region1: #{tpu_custom_call.1} parent=0
    #allocation2 [shape = 'u8[1024]{0}', space=vmem, size = 0x400, scoped, tag = 'output window, operand 0, single buffered']
    #allocation3 [shape = 's32[1]{0}', space=sflag, size = 0x4, scoped, tag = 'scoped memory for tpu_custom_call.1']
    %8 = vsyncpa [#allocation3], 0
    // Predicated region
    $region2: #{tpu_custom_call.1} parent=1 // pred_check
      _
    $region3: #{tpu_custom_call.1} parent=1 // pred_check_branch
      %10 = sbr.rel (0) target = $region5
    $region4: #{tpu_custom_call.1} parent=1 // pred_region
      _
    $region5: #{tpu_custom_call.1} parent=1 // pred_fallthru
      _
    // Predicated region
    $region6: #{tpu_custom_call.1} parent=1 // pred_check
      _
    $region7: #{tpu_custom_call.1} parent=1 // pred_check_branch
      %12 = sbr.rel (0) target = $region9
    $region8: #{tpu_custom_call.1} parent=1 // pred_region
      _
    $region9: #{tpu_custom_call.1} parent=1 // pred_fallthru
      _
    // Predicated region
    $region10: #{tpu_custom_call.1} parent=1 // pred_check
      _
    $region11: #{tpu_custom_call.1} parent=1 // pred_check_branch
      %14 = sbr.rel (0) target = $region13
    $region12: #{tpu_custom_call.1} parent=1 // pred_region
      _
    $region13: #{tpu_custom_call.1} parent=1 // pred_fallthru
      _
    %v16 = vld [vmem:[%s0] sm:$0xff]
    %v17 = vld [vmem:[%s0 + $0x8] sm:$0xff]
    %v18 = vmax.f32 %v16, 0.0
    %v19 = vmax.f32 %v17, 0.0
    %v20 = vld [vmem:[%s2] sm:$0xff]
    %v21 = vld [vmem:[%s2 + $0x8] sm:$0xff]
    %v22 = vld [vmem:[%s2 + $0x10] sm:$0xff]
    %v23 = vld [vmem:[%s2 + $0x18] sm:$0xff]
    %v24 = vpack.c.bf16 %v21, %v20
    %v25 = vpack.c.bf16 %v23, %v22
    %v26 = vld [vmem:[%s2 + $0x20] sm:$0x1]
    %v27 = vpack.c.bf16 %v19, %v18
    %v28 = vlaneseq
    %v29 = vshrl.u32 %v28, 7
    %v30 = vsub.s32 0, %v29
    %v31 = vrot.slane %v26, %v30
    %vm32 = vcmask 261120
    %v34 = vsel %vm32, %v27, 0
    %36 = vmatprep.subr.bf16.mxu0 0
    %37 = vmatpush1.bf16.msra.mxu0 %v24
    %38 = vmatprep.subr.bf16.mxu0 0
    %39 = vmatpush1.bf16.msra.mxu0 %v25
    %40 = vmatprep.subr.bf16.mxu0 0
    %41 = vmatpush1.bf16.msra.mxu0 0
    %42 = vmatprep.subr.bf16.mxu0 0
    %43 = vmatpush1.bf16.msra.mxu0 0
    %44 = vmatprep.subr.bf16.mxu0 0
    %45 = vmatpush1.bf16.msra.mxu0 0
    %46 = vmatprep.subr.bf16.mxu0 0
    %47 = vmatpush1.bf16.msra.mxu0 0
    %48 = vmatprep.subr.bf16.mxu0 0
    %49 = vmatpush1.bf16.msra.mxu0 0
    %50 = vmatprep.subr.bf16.mxu0 0
    %51 = vmatpush1.bf16.msra.mxu0 0
    %52 = vmatprep.subr.bf16.mxu0 0
    %53 = vmatpush1.bf16.msra.mxu0 0
    %54 = vmatprep.subr.bf16.mxu0 0
    %55 = vmatpush1.bf16.msra.mxu0 0
    %56 = vmatprep.subr.bf16.mxu0 0
    %57 = vmatpush1.bf16.msra.mxu0 0
    %58 = vmatprep.subr.bf16.mxu0 0
    %59 = vmatpush1.bf16.msra.mxu0 0
    %60 = vmatprep.subr.bf16.mxu0 0
    %61 = vmatpush1.bf16.msra.mxu0 0
    %62 = vmatprep.subr.bf16.mxu0 0
    %63 = vmatpush1.bf16.msra.mxu0 0
    %64 = vmatprep.subr.bf16.mxu0 0
    %65 = vmatpush1.bf16.msra.mxu0 0
    %66 = vmatprep.subr.bf16.mxu0 0
    %67 = vmatpush1.bf16.msra.mxu0 0
    %68 = vmatprep.mubr.bf16.mxu0 0
    %69 = vmatmul.mubr.bf16.gmra.mrb[0].mxu0 %v34
    %v70 = vpop.f32.mrb[0].mxu0
    %v71 = vadd.f32 %v31, %v70
    %v72 = vpop.f32.mrb[0].mxu0
    %v73 = vpop.f32.mrb[0].mxu0
    %v74 = vadd.f32 %v31, %v73
    %v75 = vpop.f32.mrb[0].mxu0
    %76 = vdwg.mxu0
    %v77 = vmax.f32 %v71, 0.0
    %v78 = vmax.f32 %v74, 0.0
    %v79 = vld [vmem:[%s1] sm:$0xff]
    %v80 = vld [vmem:[%s1 + $0x8] sm:$0xff]
    %82 = vset.pattern.permute.xlu0 0
    %83 = vperm.xlu0 %82, %v79
    %v84 = vpop.permute.xlu0 %83
    %87 = vset.pattern.permute.xlu0 0
    %88 = vperm.xlu0 %87, %v80
    %v89 = vpop.permute.xlu0 %88
    %v91 = vmul.f32 %v77, %v84
    %v92 = vmul.f32 %v78, %v89
    %v93 = vsel %vm32, %v91, 0.0
    %v94 = vrot.slane %v93, 4
    %v95 = vadd.f32 %v93, %v94
    %v96 = vrot.slane %v95, 2
    %v97 = vadd.f32 %v95, %v96
    %v98 = vrot.slane %v97, 1
    %v99 = vadd.f32 %v97, %v98
    %v100 = vsel %vm32, %v92, 0.0
    %v101 = vrot.slane %v100, 4
    %v102 = vadd.f32 %v100, %v101
    %v103 = vrot.slane %v102, 2
    %v104 = vadd.f32 %v102, %v103
    %v105 = vrot.slane %v104, 1
    %v106 = vadd.f32 %v104, %v105
    %vm109 = vcmask 1041409
    %v110 = vsel %vm109, %v106, %v99
    %vm112 = vcmask 254976
    %113 = vst.msk [vmem:[#allocation2] sm:$0x3] %vm112, %v110
    // Predicated region
    $region14: #{tpu_custom_call.1} parent=1 // pred_check
      _
    $region15: #{tpu_custom_call.1} parent=1 // pred_check_branch
      %115 = sbr.rel (0) target = $region17
    $region16: #{tpu_custom_call.1} parent=1 // pred_region
      %s117 = ssub.s32 32, 32
      %118 = vsyncadd [#allocation3], %s117
      %s120 = sshll.u32 [#allocation2], 4
      %s121 = int_to_ptr.vmem [resolvable:$true] %s120
      %123 = dma.vmem_to_hbm [thread:$0]  %s121, 32, %s3, [#allocation3]
    $region17: #{tpu_custom_call.1} parent=1 // pred_fallthru
      _
    // Predicated region
    $region18: #{tpu_custom_call.1} parent=1 // pred_check
      _
    $region19: #{tpu_custom_call.1} parent=1 // pred_check_branch
      %125 = sbr.rel (0) target = $region21
    $region20: #{tpu_custom_call.1} parent=1 // pred_region
      %126 = dma.done [#allocation3], 32
    $region21: #{tpu_custom_call.1} parent=1 // pred_fallthru
      _
    %127 = vsyncpa [#allocation3], 1

</llo_original>
